<compile_context>
chip_gen: v7x
topology: tpu7x:2x2x1
jax: 0.10.0
libtpu: 0.0.40
codegen_flags: <defaults>
</compile_context>

<pallas_src>
import functools

import jax
import jax.numpy as jnp
from jax.experimental import pallas as pl
from jax.experimental.pallas import tpu as pltpu


def _round_up(x, m):
    return ((x + m - 1) // m) * m


def simple_nn_kernel(x_ref, w1_ref, b1_ref, w2_ref, b2_ref, w3_ref, b3_ref, o_ref):
    # x tile streamed as f32; cast to bf16 in-register (kernel is DMA-bound,
    # VPU cast slots are free) for the native bf16 MXU path; accumulate in f32.
    x = x_ref[...].astype(jnp.bfloat16)

    # fc1 + ReLU (dropout == identity in eval mode)
    h1 = jnp.dot(x, w1_ref[...], preferred_element_type=jnp.float32) + b1_ref[...]
    h1 = jnp.maximum(h1, 0.0)

    # fc2 + ReLU (dropout == identity in eval mode)
    h2 = jnp.dot(h1.astype(jnp.bfloat16), w2_ref[...],
                 preferred_element_type=jnp.float32) + b2_ref[...]
    h2 = jnp.maximum(h2, 0.0)

    # fc3 — only the true logit columns are produced / written back.
    out = jnp.dot(h2.astype(jnp.bfloat16), w3_ref[...],
                  preferred_element_type=jnp.float32) + b3_ref[...]
    o_ref[...] = out.astype(o_ref.dtype)


def prepare_params(w1, b1, w2, b2, w3, b3):
    """One-time parameter prep (outside the per-call path).

    Weights -> bf16 (MXU operands), biases -> f32 row vectors. w*: [in, out]
    (transposed vs. nn.Linear.weight), b*: [out].
    """
    return (w1.astype(jnp.bfloat16), b1.reshape(1, -1).astype(jnp.float32),
            w2.astype(jnp.bfloat16), b2.reshape(1, -1).astype(jnp.float32),
            w3.astype(jnp.bfloat16), b3.reshape(1, -1).astype(jnp.float32))


@functools.partial(jax.jit, static_argnames=("batch_tile",))
def simple_nn_forward(x, w1, b1, w2, b2, w3, b3, *, batch_tile=2048):
    """x: [B, d_in] f32 (unpadded). Params as produced by prepare_params()."""
    batch, d_in = x.shape
    hidden = w1.shape[1]
    out_dim = w3.shape[1]

    # Batch tiling: >= 4 grid steps whenever batch allows (both v7x TCs get
    # work, double-buffering overlaps), TB a multiple of 8 sublanes, batch
    # padding bounded to < one tile.
    n_steps = max(1, pl.cdiv(batch, batch_tile))
    n_steps = max(n_steps, min(4, pl.cdiv(batch, 8)))
    TB = _round_up(pl.cdiv(batch, n_steps), 8)
    B_pad = TB * n_steps

    xp = x if B_pad == batch else jnp.pad(x, ((0, B_pad - batch), (0, 0)))

    flops = 2 * B_pad * (d_in * hidden + hidden * hidden + hidden * out_dim)
    bytes_accessed = (xp.size * xp.dtype.itemsize
                      + (w1.size + w2.size + w3.size) * 2
                      + (b1.size + b2.size + b3.size) * 4
                      + B_pad * out_dim * 4)

    out = pl.pallas_call(
        simple_nn_kernel,
        out_shape=jax.ShapeDtypeStruct((B_pad, out_dim), jnp.float32),
        grid=(n_steps,),
        in_specs=[
            # Streamed activations: unpadded feature dim (== full array dim).
            pl.BlockSpec((TB, d_in), lambda i: (i, 0)),
            # Resident weights / biases (constant index_map -> fetched once).
            pl.BlockSpec((d_in, hidden), lambda i: (0, 0)),
            pl.BlockSpec((1, hidden), lambda i: (0, 0)),
            pl.BlockSpec((hidden, hidden), lambda i: (0, 0)),
            pl.BlockSpec((1, hidden), lambda i: (0, 0)),
            pl.BlockSpec((hidden, out_dim), lambda i: (0, 0)),
            pl.BlockSpec((1, out_dim), lambda i: (0, 0)),
        ],
        # Narrow writeback: only the real out_dim columns hit HBM.
        out_specs=pl.BlockSpec((TB, out_dim), lambda i: (i, 0)),
        compiler_params=pltpu.CompilerParams(
            dimension_semantics=("parallel",),
            vmem_limit_bytes=32 * 1024 * 1024,
        ),
        cost_estimate=pl.CostEstimate(
            flops=flops, transcendentals=0, bytes_accessed=bytes_accessed),
    )(xp, w1, b1, w2, b2, w3, b3)

    return out if B_pad == batch else out[:batch]


def init_linear_params(key, fan_in, fan_out):
    # PyTorch nn.Linear default init: U(-1/sqrt(fan_in), 1/sqrt(fan_in)).
    kw, kb = jax.random.split(key)
    bound = 1.0 / jnp.sqrt(fan_in)
    w = jax.random.uniform(kw, (fan_in, fan_out), jnp.float32, -bound, bound)
    b = jax.random.uniform(kb, (fan_out,), jnp.float32, -bound, bound)
    return w, b


def _reference(x, w1, b1, w2, b2, w3, b3):
    # Same bf16-operand / f32-accumulate math as the kernel.
    h1 = jnp.maximum(
        jnp.dot(x.astype(jnp.bfloat16), w1, preferred_element_type=jnp.float32) + b1, 0.0)
    h2 = jnp.maximum(
        jnp.dot(h1.astype(jnp.bfloat16), w2, preferred_element_type=jnp.float32) + b2, 0.0)
    return jnp.dot(h2.astype(jnp.bfloat16), w3, preferred_element_type=jnp.float32) + b3


if __name__ == "__main__":
    # Shapes consistent with the module: input_size = #tabular features,
    # hidden_size = 64, output_size = 3.
    input_size = 32
    hidden_size = 64
    output_size = 3

    key = jax.random.PRNGKey(0)
    kx, kx2, k1, k2, k3 = jax.random.split(key, 5)

    w1, b1 = init_linear_params(k1, input_size, hidden_size)
    w2, b2 = init_linear_params(k2, hidden_size, hidden_size)
    w3, b3 = init_linear_params(k3, hidden_size, output_size)
    params = prepare_params(w1, b1, w2, b2, w3, b3)

    # Case 1: tiny batch (single grid step).
    x_small = jax.random.normal(kx, (8, input_size), jnp.float32)
    out_small = simple_nn_forward(x_small, *params)
    jax.block_until_ready(out_small)
    assert out_small.shape == (8, output_size)
    ref_small = _reference(x_small, *params)
    assert jnp.allclose(out_small, ref_small, atol=1e-3, rtol=1e-3), \
        f"max abs err {jnp.max(jnp.abs(out_small - ref_small))}"

    # Case 2: batch not a multiple of the tile -> exercises multi-step grid,
    # batch padding and the final slice.
    x_big = jax.random.normal(kx2, (200, input_size), jnp.float32)
    out_big = simple_nn_forward(x_big, *params)
    jax.block_until_ready(out_big)
    assert out_big.shape == (200, output_size)
    ref_big = _reference(x_big, *params)
    assert jnp.allclose(out_big, ref_big, atol=1e-3, rtol=1e-3), \
        f"max abs err {jnp.max(jnp.abs(out_big - ref_big))}"

    print("KERNEL_OK")
</pallas_src>

<mosaic_0001>
module attributes {stable_mosaic.version = 11 : i64} {
  func.func @simple_nn_kernel(%arg0: i32, %arg1: memref<8x32xf32, #tpu.memory_space<vmem>>, %arg2: memref<32x64xbf16, #tpu.memory_space<vmem>>, %arg3: memref<1x64xf32, #tpu.memory_space<vmem>>, %arg4: memref<64x64xbf16, #tpu.memory_space<vmem>>, %arg5: memref<1x64xf32, #tpu.memory_space<vmem>>, %arg6: memref<64x3xbf16, #tpu.memory_space<vmem>>, %arg7: memref<1x3xf32, #tpu.memory_space<vmem>>, %arg8: memref<8x3xf32, #tpu.memory_space<vmem>>) attributes {dimension_semantics = [#tpu.dimension_semantics<parallel>], iteration_bounds = array<i64: 1>, scalar_prefetch = 0 : i64, scratch_operands = 0 : i64, tpu.core_type = #tpu.core_type<tc>, window_params = [{transform_indices = @transform_0, window_bounds = array<i64: 8, 32>}, {pipeline_mode = #tpu.pipeline_mode<synchronous>, transform_indices = @transform_1, window_bounds = array<i64: 32, 64>}, {pipeline_mode = #tpu.pipeline_mode<synchronous>, transform_indices = @transform_2, window_bounds = array<i64: 1, 64>}, {pipeline_mode = #tpu.pipeline_mode<synchronous>, transform_indices = @transform_3, window_bounds = array<i64: 64, 64>}, {pipeline_mode = #tpu.pipeline_mode<synchronous>, transform_indices = @transform_4, window_bounds = array<i64: 1, 64>}, {pipeline_mode = #tpu.pipeline_mode<synchronous>, transform_indices = @transform_5, window_bounds = array<i64: 64, 3>}, {pipeline_mode = #tpu.pipeline_mode<synchronous>, transform_indices = @transform_6, window_bounds = array<i64: 1, 3>}, {transform_indices = @transform_7, window_bounds = array<i64: 8, 3>}]} {
    %c0 = arith.constant 0 : index
    %c0_0 = arith.constant 0 : index
    %0 = vector.load %arg1[%c0, %c0_0] : memref<8x32xf32, #tpu.memory_space<vmem>>, vector<8x32xf32>
    %1 = arith.truncf %0 : vector<8x32xf32> to vector<8x32xbf16>
    %c0_1 = arith.constant 0 : index
    %c0_2 = arith.constant 0 : index
    %2 = vector.load %arg2[%c0_1, %c0_2] : memref<32x64xbf16, #tpu.memory_space<vmem>>, vector<32x64xbf16>
    %cst = arith.constant dense<0.000000e+00> : vector<8x64xf32>
    %3 = tpu.matmul %1, %2, %cst {dimension_numbers = #tpu.dot_dimension_numbers<[1], [0], [0], [1], [0, 0, 1, 1], [], []>} : vector<8x32xbf16>, vector<32x64xbf16>, vector<8x64xf32> -> vector<8x64xf32>
    %c0_3 = arith.constant 0 : index
    %c0_4 = arith.constant 0 : index
    %4 = vector.load %arg3[%c0_3, %c0_4] : memref<1x64xf32, #tpu.memory_space<vmem>>, vector<1x64xf32>
    %5 = vector.broadcast %4 : vector<1x64xf32> to vector<8x64xf32>
    %6 = arith.addf %3, %5 : vector<8x64xf32>
    %cst_5 = arith.constant 0.000000e+00 : f32
    %7 = vector.broadcast %cst_5 : f32 to vector<8x64xf32>
    %8 = arith.maximumf %6, %7 : vector<8x64xf32>
    %9 = arith.truncf %8 : vector<8x64xf32> to vector<8x64xbf16>
    %c0_6 = arith.constant 0 : index
    %c0_7 = arith.constant 0 : index
    %10 = vector.load %arg4[%c0_6, %c0_7] : memref<64x64xbf16, #tpu.memory_space<vmem>>, vector<64x64xbf16>
    %cst_8 = arith.constant dense<0.000000e+00> : vector<8x64xf32>
    %11 = tpu.matmul %9, %10, %cst_8 {dimension_numbers = #tpu.dot_dimension_numbers<[1], [0], [0], [1], [0, 0, 1, 1], [], []>} : vector<8x64xbf16>, vector<64x64xbf16>, vector<8x64xf32> -> vector<8x64xf32>
    %c0_9 = arith.constant 0 : index
    %c0_10 = arith.constant 0 : index
    %12 = vector.load %arg5[%c0_9, %c0_10] : memref<1x64xf32, #tpu.memory_space<vmem>>, vector<1x64xf32>
    %13 = vector.broadcast %12 : vector<1x64xf32> to vector<8x64xf32>
    %14 = arith.addf %11, %13 : vector<8x64xf32>
    %cst_11 = arith.constant 0.000000e+00 : f32
    %15 = vector.broadcast %cst_11 : f32 to vector<8x64xf32>
    %16 = arith.maximumf %14, %15 : vector<8x64xf32>
    %17 = arith.truncf %16 : vector<8x64xf32> to vector<8x64xbf16>
    %c0_12 = arith.constant 0 : index
    %c0_13 = arith.constant 0 : index
    %18 = vector.load %arg6[%c0_12, %c0_13] : memref<64x3xbf16, #tpu.memory_space<vmem>>, vector<64x3xbf16>
    %cst_14 = arith.constant dense<0.000000e+00> : vector<8x3xf32>
    %19 = tpu.matmul %17, %18, %cst_14 {dimension_numbers = #tpu.dot_dimension_numbers<[1], [0], [0], [1], [0, 0, 1, 1], [], []>} : vector<8x64xbf16>, vector<64x3xbf16>, vector<8x3xf32> -> vector<8x3xf32>
    %c0_15 = arith.constant 0 : index
    %c0_16 = arith.constant 0 : index
    %20 = vector.load %arg7[%c0_15, %c0_16] : memref<1x3xf32, #tpu.memory_space<vmem>>, vector<1x3xf32>
    %21 = vector.broadcast %20 : vector<1x3xf32> to vector<8x3xf32>
    %22 = arith.addf %19, %21 : vector<8x3xf32>
    %c0_17 = arith.constant 0 : index
    %c0_18 = arith.constant 0 : index
    %23 = vector.load %arg8[%c0_17, %c0_18] : memref<8x3xf32, #tpu.memory_space<vmem>>, vector<8x3xf32>
    tpu.vector_store %arg8[%c0_17, %c0_18], %22 {strides = array<i32>} : memref<8x3xf32, #tpu.memory_space<vmem>>, vector<8x3xf32>,
    return
  }
  func.func @transform_0(%arg0: i32) -> (i32, i32) {
    %c0_i32 = arith.constant 0 : i32
    %c0_i32_0 = arith.constant 0 : i32
    return %arg0, %c0_i32 : i32, i32
  }
  func.func @transform_1(%arg0: i32) -> (i32, i32) {
    %c0_i32 = arith.constant 0 : i32
    %c0_i32_0 = arith.constant 0 : i32
    %c0_i32_1 = arith.constant 0 : i32
    return %c0_i32, %c0_i32_0 : i32, i32
  }
  func.func @transform_2(%arg0: i32) -> (i32, i32) {
    %c0_i32 = arith.constant 0 : i32
    %c0_i32_0 = arith.constant 0 : i32
    %c0_i32_1 = arith.constant 0 : i32
    return %c0_i32, %c0_i32_0 : i32, i32
  }
  func.func @transform_3(%arg0: i32) -> (i32, i32) {
    %c0_i32 = arith.constant 0 : i32
    %c0_i32_0 = arith.constant 0 : i32
    %c0_i32_1 = arith.constant 0 : i32
    return %c0_i32, %c0_i32_0 : i32, i32
  }
  func.func @transform_4(%arg0: i32) -> (i32, i32) {
    %c0_i32 = arith.constant 0 : i32
    %c0_i32_0 = arith.constant 0 : i32
    %c0_i32_1 = arith.constant 0 : i32
    return %c0_i32, %c0_i32_0 : i32, i32
  }
  func.func @transform_5(%arg0: i32) -> (i32, i32) {
    %c0_i32 = arith.constant 0 : i32
    %c0_i32_0 = arith.constant 0 : i32
    %c0_i32_1 = arith.constant 0 : i32
    return %c0_i32, %c0_i32_0 : i32, i32
  }
  func.func @transform_6(%arg0: i32) -> (i32, i32) {
    %c0_i32 = arith.constant 0 : i32
    %c0_i32_0 = arith.constant 0 : i32
    %c0_i32_1 = arith.constant 0 : i32
    return %c0_i32, %c0_i32_0 : i32, i32
  }
  func.func @transform_7(%arg0: i32) -> (i32, i32) {
    %c0_i32 = arith.constant 0 : i32
    %c0_i32_0 = arith.constant 0 : i32
    return %arg0, %c0_i32 : i32, i32
  }
}

</mosaic_0001>

<llo_original>
// kernel: simple_nn_forward.1
$region0: #{simple_nn_forward.1}
  #allocation0 [shape = 'u32[]', space=smem, size = 0x4, offset = 0x4, fixed_abs, tag = 'smem constant byte address 0x4 - core index']
  #allocation1 [shape = 'u32[144,128]{1,0:T(1,128)}', space=vmem, size = 0x12000, scoped, tag = 'internal scratch']
  %s0 = inlined_call_operand.vmem [shape: f32[8,32], index: 0, kind: input, shape index: {}]
  %s1 = inlined_call_operand.hbm [shape: bf16[32,64], index: 1, kind: input, shape index: {}]
  %s2 = inlined_call_operand.vmem [shape: f32[1,64], index: 2, kind: input, shape index: {}]
  %s3 = inlined_call_operand.vmem [shape: bf16[64,64], index: 3, kind: input, shape index: {}]
  %s4 = inlined_call_operand.vmem [shape: f32[1,64], index: 4, kind: input, shape index: {}]
  %s5 = inlined_call_operand.vmem [shape: bf16[64,3], index: 5, kind: input, shape index: {}]
  %s6 = inlined_call_operand.vmem [shape: f32[1,3], index: 6, kind: input, shape index: {}]
  %s7 = inlined_call_operand.vmem [shape: f32[8,3], index: 7, kind: output, shape index: {}]
  %s8 = sld [smem:[#allocation0]]
  $region42: #{simple_nn_forward.1} parent=0
    _
  %s10 = ssub.s32 1, %s8
  %s11 = scalar_select 0, %s10, %s8
  $region1: #{simple_nn_forward.1} parent=0
    #allocation2 [shape = 'u8[8192]{0}', space=vmem, size = 0x2000, scoped, tag = 'input window, operand 1, single buffered']
    #allocation3 [shape = 's32[1]{0}', space=sflag, size = 0x4, scoped, tag = 'scoped memory for simple_nn_forward.1']
    %12 = vsyncpa [#allocation3], 0
    // Predicated region
    $region2: #{simple_nn_forward.1} parent=1 // pred_check
      _
    $region3: #{simple_nn_forward.1} parent=1 // pred_check_branch
      %14 = sbr.rel (0) target = $region5
    $region4: #{simple_nn_forward.1} parent=1 // pred_region
      _
    $region5: #{simple_nn_forward.1} parent=1 // pred_fallthru
      _
    // Predicated region
    $region6: #{simple_nn_forward.1} parent=1 // pred_check
      _
    $region7: #{simple_nn_forward.1} parent=1 // pred_check_branch
      %16 = sbr.rel (0) target = $region9
    $region8: #{simple_nn_forward.1} parent=1 // pred_region
      %s18 = ssub.s32 256, 256
      %19 = vsyncadd [#allocation3], %s18
      %s20 = sshll.u32 [#allocation2], 4
      %s21 = int_to_ptr.vmem [resolvable:$true] %s20
      %26 = dma.hbm_to_vmem [thread:$0]  %s1, 256, %s21, [#allocation3], 64, 64, 4
    $region9: #{simple_nn_forward.1} parent=1 // pred_fallthru
      _
    // Predicated region
    $region10: #{simple_nn_forward.1} parent=1 // pred_check
      _
    $region11: #{simple_nn_forward.1} parent=1 // pred_check_branch
      %28 = sbr.rel (0) target = $region13
    $region12: #{simple_nn_forward.1} parent=1 // pred_region
      _
    $region13: #{simple_nn_forward.1} parent=1 // pred_fallthru
      _
    // Predicated region
    $region14: #{simple_nn_forward.1} parent=1 // pred_check
      _
    $region15: #{simple_nn_forward.1} parent=1 // pred_check_branch
      %30 = sbr.rel (0) target = $region17
    $region16: #{simple_nn_forward.1} parent=1 // pred_region
      _
    $region17: #{simple_nn_forward.1} parent=1 // pred_fallthru
      _
    // Predicated region
    $region18: #{simple_nn_forward.1} parent=1 // pred_check
      _
    $region19: #{simple_nn_forward.1} parent=1 // pred_check_branch
      %32 = sbr.rel (0) target = $region21
    $region20: #{simple_nn_forward.1} parent=1 // pred_region
      _
    $region21: #{simple_nn_forward.1} parent=1 // pred_fallthru
      _
    // Predicated region
    $region22: #{simple_nn_forward.1} parent=1 // pred_check
      _
    $region23: #{simple_nn_forward.1} parent=1 // pred_check_branch
      %34 = sbr.rel (0) target = $region25
    $region24: #{simple_nn_forward.1} parent=1 // pred_region
      _
    $region25: #{simple_nn_forward.1} parent=1 // pred_fallthru
      _
    // Predicated region
    $region26: #{simple_nn_forward.1} parent=1 // pred_check
      _
    $region27: #{simple_nn_forward.1} parent=1 // pred_check_branch
      %36 = sbr.rel (0) target = $region29
    $region28: #{simple_nn_forward.1} parent=1 // pred_region
      _
    $region29: #{simple_nn_forward.1} parent=1 // pred_fallthru
      _
    // Predicated region
    $region30: #{simple_nn_forward.1} parent=1 // pred_check
      _
    $region31: #{simple_nn_forward.1} parent=1 // pred_check_branch
      %38 = sbr.rel (0) target = $region33
    $region32: #{simple_nn_forward.1} parent=1 // pred_region
      %39 = dma.done [#allocation3], 256
    $region33: #{simple_nn_forward.1} parent=1 // pred_fallthru
      _
    %v41 = vld [vmem:[%s0] sm:$0xff]
    %v42 = vpack.c.bf16 %v41, %v41
    %v43 = vld [vmem:[#allocation2] sm:$0xf]
    %v44 = vld [vmem:[#allocation2 + $0x4] sm:$0xf]
    %v45 = vld [vmem:[#allocation2 + $0x8] sm:$0xf]
    %v46 = vld [vmem:[#allocation2 + $0xc] sm:$0xf]
    %v47 = vld [vmem:[%s2] sm:$0x1]
    %v49 = vlaneseq
    %v50 = vshrl.u32 %v49, 7
    %v51 = vsub.s32 0, %v50
    %v52 = vrot.slane %v47, %v51
    %v58 = vunpack.c.l.b16 %v43
    %v59 = vunpack.c.l.b16 %v44
    %v60 = vunpack.c.l.b16 %v45
    %v61 = vunpack.c.l.b16 %v46
    %v62 = vpack.c.b16 %v59, %v58
    %v63 = vpack.c.b16 %v61, %v60
    %vm66 = vcmask 261120
    %v68 = vsel %vm66, %v42, 0
    %70 = vmatprep.subr.bf16.mxu0 0
    %71 = vmatpush1.bf16.msra.mxu0 %v62
    %72 = vmatprep.subr.bf16.mxu0 0
    %73 = vmatpush1.bf16.msra.mxu0 %v63
    %74 = vmatprep.subr.bf16.mxu0 0
    %75 = vmatpush1.bf16.msra.mxu0 0
    %76 = vmatprep.subr.bf16.mxu0 0
    %77 = vmatpush1.bf16.msra.mxu0 0
    %78 = vmatprep.subr.bf16.mxu0 0
    %79 = vmatpush1.bf16.msra.mxu0 0
    %80 = vmatprep.subr.bf16.mxu0 0
    %81 = vmatpush1.bf16.msra.mxu0 0
    %82 = vmatprep.subr.bf16.mxu0 0
    %83 = vmatpush1.bf16.msra.mxu0 0
    %84 = vmatprep.subr.bf16.mxu0 0
    %85 = vmatpush1.bf16.msra.mxu0 0
    %86 = vmatprep.subr.bf16.mxu0 0
    %87 = vmatpush1.bf16.msra.mxu0 0
    %88 = vmatprep.subr.bf16.mxu0 0
    %89 = vmatpush1.bf16.msra.mxu0 0
    %90 = vmatprep.subr.bf16.mxu0 0
    %91 = vmatpush1.bf16.msra.mxu0 0
    %92 = vmatprep.subr.bf16.mxu0 0
    %93 = vmatpush1.bf16.msra.mxu0 0
    %94 = vmatprep.subr.bf16.mxu0 0
    %95 = vmatpush1.bf16.msra.mxu0 0
    %96 = vmatprep.subr.bf16.mxu0 0
    %97 = vmatpush1.bf16.msra.mxu0 0
    %98 = vmatprep.subr.bf16.mxu0 0
    %99 = vmatpush1.bf16.msra.mxu0 0
    %100 = vmatprep.subr.bf16.mxu0 0
    %101 = vmatpush1.bf16.msra.mxu0 0
    %102 = vmatprep.mubr.bf16.mxu0 0
    %103 = vmatmul.mubr.bf16.gmra.mrb[0].mxu0 %v68
    %v104 = vpop.f32.mrb[0].mxu0
    %v105 = vadd.f32 %v52, %v104
    %v106 = vpop.f32.mrb[0].mxu0
    %v107 = vpop.f32.mrb[0].mxu0
    %v108 = vpop.f32.mrb[0].mxu0
    %109 = vdwg.mxu0
    %v110 = vmax.f32 %v105, 0.0
    %v111 = vpack.c.bf16 %v110, %v110
    %v112 = vld [vmem:[%s3] sm:$0xf]
    %v113 = vld [vmem:[%s3 + $0x4] sm:$0xf]
    %v114 = vld [vmem:[%s3 + $0x8] sm:$0xf]
    %v115 = vld [vmem:[%s3 + $0xc] sm:$0xf]
    %v116 = vld [vmem:[%s3 + $0x10] sm:$0xf]
    %v117 = vld [vmem:[%s3 + $0x14] sm:$0xf]
    %v118 = vld [vmem:[%s3 + $0x18] sm:$0xf]
    %v119 = vld [vmem:[%s3 + $0x1c] sm:$0xf]
    %v120 = vld [vmem:[%s4] sm:$0x1]
    %v122 = vlaneseq
    %v123 = vshrl.u32 %v122, 7
    %v124 = vsub.s32 0, %v123
    %v125 = vrot.slane %v120, %v124
    %v135 = vunpack.c.l.b16 %v112
    %v136 = vunpack.c.l.b16 %v113
    %v137 = vunpack.c.l.b16 %v114
    %v138 = vunpack.c.l.b16 %v115
    %v139 = vunpack.c.l.b16 %v116
    %v140 = vunpack.c.l.b16 %v117
    %v141 = vunpack.c.l.b16 %v118
    %v142 = vunpack.c.l.b16 %v119
    %v143 = vpack.c.b16 %v136, %v135
    %v144 = vpack.c.b16 %v138, %v137
    %v145 = vpack.c.b16 %v140, %v139
    %v146 = vpack.c.b16 %v142, %v141
    %vm151 = vcmask 523264
    %v153 = vsel %vm151, %v111, 0
    %155 = vmatprep.subr.bf16.mxu0 0
    %156 = vmatpush1.bf16.msra.mxu0 %v143
    %157 = vmatprep.subr.bf16.mxu0 0
    %158 = vmatpush1.bf16.msra.mxu0 %v144
    %159 = vmatprep.subr.bf16.mxu0 0
    %160 = vmatpush1.bf16.msra.mxu0 %v145
    %161 = vmatprep.subr.bf16.mxu0 0
    %162 = vmatpush1.bf16.msra.mxu0 %v146
    %163 = vmatprep.subr.bf16.mxu0 0
    %164 = vmatpush1.bf16.msra.mxu0 0
    %165 = vmatprep.subr.bf16.mxu0 0
    %166 = vmatpush1.bf16.msra.mxu0 0
    %167 = vmatprep.subr.bf16.mxu0 0
    %168 = vmatpush1.bf16.msra.mxu0 0
    %169 = vmatprep.subr.bf16.mxu0 0
    %170 = vmatpush1.bf16.msra.mxu0 0
    %171 = vmatprep.subr.bf16.mxu0 0
    %172 = vmatpush1.bf16.msra.mxu0 0
    %173 = vmatprep.subr.bf16.mxu0 0
    %174 = vmatpush1.bf16.msra.mxu0 0
    %175 = vmatprep.subr.bf16.mxu0 0
    %176 = vmatpush1.bf16.msra.mxu0 0
    %177 = vmatprep.subr.bf16.mxu0 0
    %178 = vmatpush1.bf16.msra.mxu0 0
    %179 = vmatprep.subr.bf16.mxu0 0
    %180 = vmatpush1.bf16.msra.mxu0 0
    %181 = vmatprep.subr.bf16.mxu0 0
    %182 = vmatpush1.bf16.msra.mxu0 0
    %183 = vmatprep.subr.bf16.mxu0 0
    %184 = vmatpush1.bf16.msra.mxu0 0
    %185 = vmatprep.subr.bf16.mxu0 0
    %186 = vmatpush1.bf16.msra.mxu0 0
    %187 = vmatprep.mubr.bf16.mxu0 0
    %188 = vmatmul.mubr.bf16.gmra.mrb[0].mxu0 %v153
    %v189 = vpop.f32.mrb[0].mxu0
    %v190 = vadd.f32 %v125, %v189
    %v191 = vpop.f32.mrb[0].mxu0
    %v192 = vpop.f32.mrb[0].mxu0
    %v193 = vpop.f32.mrb[0].mxu0
    %194 = vdwg.mxu0
    %v195 = vmax.f32 %v190, 0.0
    %v196 = vpack.c.bf16 %v195, %v195
    %v197 = vld [vmem:[%s5] sm:$0xf]
    %v198 = vld [vmem:[%s5 + $0x4] sm:$0xf]
    %v199 = vld [vmem:[%s5 + $0x8] sm:$0xf]
    %v200 = vld [vmem:[%s5 + $0xc] sm:$0xf]
    %v201 = vld [vmem:[%s5 + $0x10] sm:$0xf]
    %v202 = vld [vmem:[%s5 + $0x14] sm:$0xf]
    %v203 = vld [vmem:[%s5 + $0x18] sm:$0xf]
    %v204 = vld [vmem:[%s5 + $0x1c] sm:$0xf]
    %v205 = vld [vmem:[%s6] sm:$0x1]
    %v207 = vlaneseq
    %v208 = vshrl.u32 %v207, 7
    %v209 = vsub.s32 0, %v208
    %v210 = vrot.slane %v205, %v209
    %v220 = vunpack.c.l.b16 %v197
    %v221 = vunpack.c.l.b16 %v198
    %v222 = vunpack.c.l.b16 %v199
    %v223 = vunpack.c.l.b16 %v200
    %v224 = vunpack.c.l.b16 %v201
    %v225 = vunpack.c.l.b16 %v202
    %v226 = vunpack.c.l.b16 %v203
    %v227 = vunpack.c.l.b16 %v204
    %v228 = vpack.c.b16 %v221, %v220
    %v229 = vpack.c.b16 %v223, %v222
    %v230 = vpack.c.b16 %v225, %v224
    %v231 = vpack.c.b16 %v227, %v226
    %v237 = vsel %vm151, %v196, 0
    %239 = vmatprep.subr.bf16.mxu0 0
    %240 = vmatpush1.bf16.msra.mxu0 %v228
    %241 = vmatprep.subr.bf16.mxu0 0
    %242 = vmatpush1.bf16.msra.mxu0 %v229
    %243 = vmatprep.subr.bf16.mxu0 0
    %244 = vmatpush1.bf16.msra.mxu0 %v230
    %245 = vmatprep.subr.bf16.mxu0 0
    %246 = vmatpush1.bf16.msra.mxu0 %v231
    %247 = vmatprep.subr.bf16.mxu0 0
    %248 = vmatpush1.bf16.msra.mxu0 0
    %249 = vmatprep.subr.bf16.mxu0 0
    %250 = vmatpush1.bf16.msra.mxu0 0
    %251 = vmatprep.subr.bf16.mxu0 0
    %252 = vmatpush1.bf16.msra.mxu0 0
    %253 = vmatprep.subr.bf16.mxu0 0
    %254 = vmatpush1.bf16.msra.mxu0 0
    %255 = vmatprep.subr.bf16.mxu0 0
    %256 = vmatpush1.bf16.msra.mxu0 0
    %257 = vmatprep.subr.bf16.mxu0 0
    %258 = vmatpush1.bf16.msra.mxu0 0
    %259 = vmatprep.subr.bf16.mxu0 0
    %260 = vmatpush1.bf16.msra.mxu0 0
    %261 = vmatprep.subr.bf16.mxu0 0
    %262 = vmatpush1.bf16.msra.mxu0 0
    %263 = vmatprep.subr.bf16.mxu0 0
    %264 = vmatpush1.bf16.msra.mxu0 0
    %265 = vmatprep.subr.bf16.mxu0 0
    %266 = vmatpush1.bf16.msra.mxu0 0
    %267 = vmatprep.subr.bf16.mxu0 0
    %268 = vmatpush1.bf16.msra.mxu0 0
    %269 = vmatprep.subr.bf16.mxu0 0
    %270 = vmatpush1.bf16.msra.mxu0 0
    %271 = vmatprep.mubr.bf16.mxu0 0
    %272 = vmatmul.mubr.bf16.gmra.mrb[0].mxu0 %v237
    %v273 = vpop.f32.mrb[0].mxu0
    %v274 = vadd.f32 %v210, %v273
    %v275 = vpop.f32.mrb[0].mxu0
    %v276 = vpop.f32.mrb[0].mxu0
    %v277 = vpop.f32.mrb[0].mxu0
    %278 = vdwg.mxu0
    %vm279 = vcmask 23552
    %280 = vst.msk [vmem:[%s7] sm:$0xff] %vm279, %v274
    // Predicated region
    $region34: #{simple_nn_forward.1} parent=1 // pred_check
      _
    $region35: #{simple_nn_forward.1} parent=1 // pred_check_branch
      %282 = sbr.rel (0) target = $region37
    $region36: #{simple_nn_forward.1} parent=1 // pred_region
      _
    $region37: #{simple_nn_forward.1} parent=1 // pred_fallthru
      _
    // Predicated region
    $region38: #{simple_nn_forward.1} parent=1 // pred_check
      _
    $region39: #{simple_nn_forward.1} parent=1 // pred_check_branch
      %284 = sbr.rel (0) target = $region41
    $region40: #{simple_nn_forward.1} parent=1 // pred_region
      _
    $region41: #{simple_nn_forward.1} parent=1 // pred_fallthru
      _
    %285 = vsyncpa [#allocation3], 1

</llo_original>
